<compile_context>
chip_gen: v5e
topology: v5e:2x2
jax: 0.10.0
libtpu: 0.0.40
codegen_flags: <defaults>
</compile_context>

<pallas_src>
import jax
import jax.numpy as jnp
from jax.experimental import pallas as pl
from jax.experimental.pallas import tpu as pltpu

IN_FEATURES = 28 * 28      # 784
K_PAD = 896                # 7 * 128  (fc1 contraction dim, padded)
HID = 64
HID_PAD = 128              # hidden width padded to one full lane group
NUM_CLASSES = 10
OUT_PAD = 128              # class dim padded for lane-dense stores


def mlp_kernel(x_ref, w1_ref, b1_ref, w2_ref, b2_ref,
               w3_ref, b3_ref, w4_ref, b4_ref, o_ref):
    # fc1 + relu  (bf16 operands, f32 accumulation on the MXU)
    h = jnp.dot(x_ref[...], w1_ref[...], preferred_element_type=jnp.float32)
    h = jnp.maximum(h + b1_ref[...], 0.0)
    # fc2 + relu
    h = jnp.dot(h.astype(jnp.bfloat16), w2_ref[...],
                preferred_element_type=jnp.float32)
    h = jnp.maximum(h + b2_ref[...], 0.0)
    # fc3 + relu
    h = jnp.dot(h.astype(jnp.bfloat16), w3_ref[...],
                preferred_element_type=jnp.float32)
    h = jnp.maximum(h + b3_ref[...], 0.0)
    # fc4
    logits = jnp.dot(h.astype(jnp.bfloat16), w4_ref[...],
                     preferred_element_type=jnp.float32)
    logits = logits + b4_ref[...]
    # Mask padded class lanes (cols >= 10) so they contribute nothing to the
    # log-softmax, then compute the numerically stable log-softmax in f32.
    lane = jax.lax.broadcasted_iota(jnp.int32, logits.shape, 1)
    logits = jnp.where(lane < NUM_CLASSES, logits, jnp.float32(-1e30))
    m = jnp.max(logits, axis=1, keepdims=True)
    lse = jnp.log(jnp.sum(jnp.exp(logits - m), axis=1, keepdims=True)) + m
    o_ref[...] = logits - lse


def _round_up(n, m):
    return ((n + m - 1) // m) * m


def mlp_forward(x, padded_params, *, tile_b=1024):
    """x: (B, 784) float32.  padded_params: output of prepare_params()."""
    B = x.shape[0]
    tb = min(tile_b, _round_up(B, 8))          # batch tile, multiple of 8
    Bp = _round_up(B, tb)                      # padded batch

    # Pad batch + feature dims, cast activations to bf16 (halves x traffic).
    xp = jnp.pad(x, ((0, Bp - B), (0, K_PAD - IN_FEATURES))).astype(jnp.bfloat16)

    p = padded_params
    grid = (Bp // tb,)

    x_spec = pl.BlockSpec((tb, K_PAD), lambda i: (i, 0))
    out_spec = pl.BlockSpec((tb, OUT_PAD), lambda i: (i, 0))
    const = lambda i: (0, 0)                   # weights resident across steps
    w_spec = lambda shape: pl.BlockSpec(shape, const)

    in_specs = [
        x_spec,
        w_spec((K_PAD, HID_PAD)),   w_spec((1, HID_PAD)),
        w_spec((HID_PAD, HID_PAD)), w_spec((1, HID_PAD)),
        w_spec((HID_PAD, HID_PAD)), w_spec((1, HID_PAD)),
        w_spec((HID_PAD, OUT_PAD)), w_spec((1, OUT_PAD)),
    ]

    param_bytes = sum(int(v.size) * v.dtype.itemsize for v in p.values())
    cost = pl.CostEstimate(
        flops=2 * Bp * (K_PAD * HID_PAD + 2 * HID_PAD * HID_PAD
                        + HID_PAD * OUT_PAD),
        transcendentals=Bp * OUT_PAD,
        bytes_accessed=int(xp.size) * 2 + param_bytes + Bp * OUT_PAD * 4,
    )

    out_padded = pl.pallas_call(
        mlp_kernel,
        out_shape=jax.ShapeDtypeStruct((Bp, OUT_PAD), jnp.float32),
        grid=grid,
        in_specs=in_specs,
        out_specs=out_spec,
        compiler_params=pltpu.CompilerParams(
            dimension_semantics=("parallel",),
            vmem_limit_bytes=48 << 20),
        cost_estimate=cost,
    )(xp,
      p["w1"], p["b1"], p["w2"], p["b2"],
      p["w3"], p["b3"], p["w4"], p["b4"])

    return out_padded[:B, :NUM_CLASSES]


def init_params(key):
    """Deterministic init mimicking torch.nn.Linear (+/- 1/sqrt(fan_in))."""
    dims = [(IN_FEATURES, HID), (HID, HID), (HID, HID), (HID, NUM_CLASSES)]
    params = {}
    keys = jax.random.split(key, 2 * len(dims))
    for i, (fan_in, fan_out) in enumerate(dims):
        bound = 1.0 / jnp.sqrt(float(fan_in))
        params[f"w{i + 1}"] = jax.random.uniform(
            keys[2 * i], (fan_in, fan_out), minval=-bound, maxval=bound,
            dtype=jnp.float32)
        params[f"b{i + 1}"] = jax.random.uniform(
            keys[2 * i + 1], (1, fan_out), minval=-bound, maxval=bound,
            dtype=jnp.float32)
    return params


def prepare_params(params):
    """Zero-pad every layer to lane-aligned (..., 128) shapes; weights -> bf16,
    biases stay f32 (added after the f32 MXU accumulation)."""
    def pad2(a, rows, cols):
        return jnp.pad(a, ((0, rows - a.shape[0]), (0, cols - a.shape[1])))
    return {
        "w1": pad2(params["w1"], K_PAD, HID_PAD).astype(jnp.bfloat16),
        "b1": pad2(params["b1"], 1, HID_PAD),
        "w2": pad2(params["w2"], HID_PAD, HID_PAD).astype(jnp.bfloat16),
        "b2": pad2(params["b2"], 1, HID_PAD),
        "w3": pad2(params["w3"], HID_PAD, HID_PAD).astype(jnp.bfloat16),
        "b3": pad2(params["b3"], 1, HID_PAD),
        "w4": pad2(params["w4"], HID_PAD, OUT_PAD).astype(jnp.bfloat16),
        "b4": pad2(params["b4"], 1, OUT_PAD),
    }


def reference_forward(x, p):
    """Pure-JAX reference using the same padded bf16 params / f32 accum."""
    xp = jnp.pad(x, ((0, 0), (0, K_PAD - IN_FEATURES))).astype(jnp.bfloat16)
    h = jnp.dot(xp, p["w1"], preferred_element_type=jnp.float32) + p["b1"]
    h = jnp.maximum(h, 0.0)
    h = jnp.dot(h.astype(jnp.bfloat16), p["w2"],
                preferred_element_type=jnp.float32) + p["b2"]
    h = jnp.maximum(h, 0.0)
    h = jnp.dot(h.astype(jnp.bfloat16), p["w3"],
                preferred_element_type=jnp.float32) + p["b3"]
    h = jnp.maximum(h, 0.0)
    logits = jnp.dot(h.astype(jnp.bfloat16), p["w4"],
                     preferred_element_type=jnp.float32) + p["b4"]
    return jax.nn.log_softmax(logits[:, :NUM_CLASSES], axis=1)


if __name__ == "__main__":
    key = jax.random.PRNGKey(0)
    pkey, xkey = jax.random.split(key)
    params = init_params(pkey)
    pparams = prepare_params(params)

    B = 8  # small demo batch; feature dim fixed by fc1 (28*28)
    x = jax.random.normal(xkey, (B, IN_FEATURES), dtype=jnp.float32)

    out = mlp_forward(x, pparams)
    out = jax.block_until_ready(out)

    # sanity: shape, log_softmax rows sum (in prob space) to ~1, matches ref
    assert out.shape == (B, NUM_CLASSES)
    row_sums = jnp.sum(jnp.exp(out), axis=1)
    assert bool(jnp.all(jnp.abs(row_sums - 1.0) < 1e-4))
    ref = reference_forward(x, pparams)
    assert bool(jnp.all(jnp.abs(out - ref) < 2e-3))

    print("KERNEL_OK")
</pallas_src>

<mosaic_0001>
module attributes {stable_mosaic.version = 11 : i64} {
  func.func @mlp_kernel(%arg0: i32, %arg1: memref<8x896xbf16, #tpu.memory_space<vmem>>, %arg2: memref<896x128xbf16, #tpu.memory_space<vmem>>, %arg3: memref<1x128xf32, #tpu.memory_space<vmem>>, %arg4: memref<128x128xbf16, #tpu.memory_space<vmem>>, %arg5: memref<1x128xf32, #tpu.memory_space<vmem>>, %arg6: memref<128x128xbf16, #tpu.memory_space<vmem>>, %arg7: memref<1x128xf32, #tpu.memory_space<vmem>>, %arg8: memref<128x128xbf16, #tpu.memory_space<vmem>>, %arg9: memref<1x128xf32, #tpu.memory_space<vmem>>, %arg10: memref<8x128xf32, #tpu.memory_space<vmem>>) attributes {dimension_semantics = [#tpu.dimension_semantics<parallel>], iteration_bounds = array<i64: 1>, scalar_prefetch = 0 : i64, scratch_operands = 0 : i64, tpu.core_type = #tpu.core_type<tc>, window_params = [{transform_indices = @transform_0, window_bounds = array<i64: 8, 896>}, {pipeline_mode = #tpu.pipeline_mode<synchronous>, transform_indices = @transform_1, window_bounds = array<i64: 896, 128>}, {pipeline_mode = #tpu.pipeline_mode<synchronous>, transform_indices = @transform_2, window_bounds = array<i64: 1, 128>}, {pipeline_mode = #tpu.pipeline_mode<synchronous>, transform_indices = @transform_3, window_bounds = array<i64: 128, 128>}, {pipeline_mode = #tpu.pipeline_mode<synchronous>, transform_indices = @transform_4, window_bounds = array<i64: 1, 128>}, {pipeline_mode = #tpu.pipeline_mode<synchronous>, transform_indices = @transform_5, window_bounds = array<i64: 128, 128>}, {pipeline_mode = #tpu.pipeline_mode<synchronous>, transform_indices = @transform_6, window_bounds = array<i64: 1, 128>}, {pipeline_mode = #tpu.pipeline_mode<synchronous>, transform_indices = @transform_7, window_bounds = array<i64: 128, 128>}, {pipeline_mode = #tpu.pipeline_mode<synchronous>, transform_indices = @transform_8, window_bounds = array<i64: 1, 128>}, {transform_indices = @transform_9, window_bounds = array<i64: 8, 128>}]} {
    %c0 = arith.constant 0 : index
    %c0_0 = arith.constant 0 : index
    %0 = vector.load %arg1[%c0, %c0_0] : memref<8x896xbf16, #tpu.memory_space<vmem>>, vector<8x896xbf16>
    %c0_1 = arith.constant 0 : index
    %c0_2 = arith.constant 0 : index
    %1 = vector.load %arg2[%c0_1, %c0_2] : memref<896x128xbf16, #tpu.memory_space<vmem>>, vector<896x128xbf16>
    %cst = arith.constant dense<0.000000e+00> : vector<8x128xf32>
    %2 = tpu.matmul %0, %1, %cst {dimension_numbers = #tpu.dot_dimension_numbers<[1], [0], [0], [1], [0, 0, 1, 1], [], []>} : vector<8x896xbf16>, vector<896x128xbf16>, vector<8x128xf32> -> vector<8x128xf32>
    %c0_3 = arith.constant 0 : index
    %c0_4 = arith.constant 0 : index
    %3 = vector.load %arg3[%c0_3, %c0_4] : memref<1x128xf32, #tpu.memory_space<vmem>>, vector<1x128xf32>
    %4 = vector.broadcast %3 : vector<1x128xf32> to vector<8x128xf32>
    %5 = arith.addf %2, %4 : vector<8x128xf32>
    %cst_5 = arith.constant 0.000000e+00 : f32
    %6 = vector.broadcast %cst_5 : f32 to vector<8x128xf32>
    %7 = arith.maximumf %5, %6 : vector<8x128xf32>
    %8 = arith.truncf %7 : vector<8x128xf32> to vector<8x128xbf16>
    %c0_6 = arith.constant 0 : index
    %c0_7 = arith.constant 0 : index
    %9 = vector.load %arg4[%c0_6, %c0_7] : memref<128x128xbf16, #tpu.memory_space<vmem>>, vector<128x128xbf16>
    %cst_8 = arith.constant dense<0.000000e+00> : vector<8x128xf32>
    %10 = tpu.matmul %8, %9, %cst_8 {dimension_numbers = #tpu.dot_dimension_numbers<[1], [0], [0], [1], [0, 0, 1, 1], [], []>} : vector<8x128xbf16>, vector<128x128xbf16>, vector<8x128xf32> -> vector<8x128xf32>
    %c0_9 = arith.constant 0 : index
    %c0_10 = arith.constant 0 : index
    %11 = vector.load %arg5[%c0_9, %c0_10] : memref<1x128xf32, #tpu.memory_space<vmem>>, vector<1x128xf32>
    %12 = vector.broadcast %11 : vector<1x128xf32> to vector<8x128xf32>
    %13 = arith.addf %10, %12 : vector<8x128xf32>
    %cst_11 = arith.constant 0.000000e+00 : f32
    %14 = vector.broadcast %cst_11 : f32 to vector<8x128xf32>
    %15 = arith.maximumf %13, %14 : vector<8x128xf32>
    %16 = arith.truncf %15 : vector<8x128xf32> to vector<8x128xbf16>
    %c0_12 = arith.constant 0 : index
    %c0_13 = arith.constant 0 : index
    %17 = vector.load %arg6[%c0_12, %c0_13] : memref<128x128xbf16, #tpu.memory_space<vmem>>, vector<128x128xbf16>
    %cst_14 = arith.constant dense<0.000000e+00> : vector<8x128xf32>
    %18 = tpu.matmul %16, %17, %cst_14 {dimension_numbers = #tpu.dot_dimension_numbers<[1], [0], [0], [1], [0, 0, 1, 1], [], []>} : vector<8x128xbf16>, vector<128x128xbf16>, vector<8x128xf32> -> vector<8x128xf32>
    %c0_15 = arith.constant 0 : index
    %c0_16 = arith.constant 0 : index
    %19 = vector.load %arg7[%c0_15, %c0_16] : memref<1x128xf32, #tpu.memory_space<vmem>>, vector<1x128xf32>
    %20 = vector.broadcast %19 : vector<1x128xf32> to vector<8x128xf32>
    %21 = arith.addf %18, %20 : vector<8x128xf32>
    %cst_17 = arith.constant 0.000000e+00 : f32
    %22 = vector.broadcast %cst_17 : f32 to vector<8x128xf32>
    %23 = arith.maximumf %21, %22 : vector<8x128xf32>
    %24 = arith.truncf %23 : vector<8x128xf32> to vector<8x128xbf16>
    %c0_18 = arith.constant 0 : index
    %c0_19 = arith.constant 0 : index
    %25 = vector.load %arg8[%c0_18, %c0_19] : memref<128x128xbf16, #tpu.memory_space<vmem>>, vector<128x128xbf16>
    %cst_20 = arith.constant dense<0.000000e+00> : vector<8x128xf32>
    %26 = tpu.matmul %24, %25, %cst_20 {dimension_numbers = #tpu.dot_dimension_numbers<[1], [0], [0], [1], [0, 0, 1, 1], [], []>} : vector<8x128xbf16>, vector<128x128xbf16>, vector<8x128xf32> -> vector<8x128xf32>
    %c0_21 = arith.constant 0 : index
    %c0_22 = arith.constant 0 : index
    %27 = vector.load %arg9[%c0_21, %c0_22] : memref<1x128xf32, #tpu.memory_space<vmem>>, vector<1x128xf32>
    %28 = vector.broadcast %27 : vector<1x128xf32> to vector<8x128xf32>
    %29 = arith.addf %26, %28 : vector<8x128xf32>
    %30 = tpu.iota {dimensions = array<i32: 1>} : vector<8x128xi32>
    %c10_i32 = arith.constant 10 : i32
    %31 = vector.broadcast %c10_i32 : i32 to vector<8x128xi32>
    %32 = arith.cmpi slt, %30, %31 : vector<8x128xi32>
    %cst_23 = arith.constant -1.000000e+30 : f32
    %33 = vector.broadcast %cst_23 : f32 to vector<8x128xf32>
    %34 = arith.select %32, %29, %33 : vector<8x128xi1>, vector<8x128xf32>
    %cst_24 = arith.constant dense<0xFF800000> : vector<8xf32>
    %35 = vector.multi_reduction <maximumf>, %34, %cst_24 [1] : vector<8x128xf32> to vector<8xf32>
    %36 = vector.shape_cast %35 : vector<8xf32> to vector<8x1xf32>
    %37 = vector.broadcast %36 : vector<8x1xf32> to vector<8x128xf32>
    %38 = arith.subf %34, %37 : vector<8x128xf32>
    %39 = math.exp %38 : vector<8x128xf32>
    %cst_25 = arith.constant dense<0.000000e+00> : vector<8xf32>
    %40 = vector.multi_reduction <add>, %39, %cst_25 [1] : vector<8x128xf32> to vector<8xf32>
    %41 = vector.shape_cast %40 : vector<8xf32> to vector<8x1xf32>
    %42 = math.log %41 : vector<8x1xf32>
    %43 = arith.addf %42, %36 : vector<8x1xf32>
    %44 = vector.broadcast %43 : vector<8x1xf32> to vector<8x128xf32>
    %45 = arith.subf %34, %44 : vector<8x128xf32>
    %c0_26 = arith.constant 0 : index
    %c0_27 = arith.constant 0 : index
    %46 = vector.load %arg10[%c0_26, %c0_27] : memref<8x128xf32, #tpu.memory_space<vmem>>, vector<8x128xf32>
    tpu.vector_store %arg10[%c0_26, %c0_27], %45 {strides = array<i32>} : memref<8x128xf32, #tpu.memory_space<vmem>>, vector<8x128xf32>,
    return
  }
  func.func @transform_0(%arg0: i32) -> (i32, i32) {
    %c0_i32 = arith.constant 0 : i32
    %c0_i32_0 = arith.constant 0 : i32
    return %arg0, %c0_i32 : i32, i32
  }
  func.func @transform_1(%arg0: i32) -> (i32, i32) {
    %c0_i32 = arith.constant 0 : i32
    %c0_i32_0 = arith.constant 0 : i32
    %c0_i32_1 = arith.constant 0 : i32
    return %c0_i32, %c0_i32_0 : i32, i32
  }
  func.func @transform_2(%arg0: i32) -> (i32, i32) {
    %c0_i32 = arith.constant 0 : i32
    %c0_i32_0 = arith.constant 0 : i32
    %c0_i32_1 = arith.constant 0 : i32
    return %c0_i32, %c0_i32_0 : i32, i32
  }
  func.func @transform_3(%arg0: i32) -> (i32, i32) {
    %c0_i32 = arith.constant 0 : i32
    %c0_i32_0 = arith.constant 0 : i32
    %c0_i32_1 = arith.constant 0 : i32
    return %c0_i32, %c0_i32_0 : i32, i32
  }
  func.func @transform_4(%arg0: i32) -> (i32, i32) {
    %c0_i32 = arith.constant 0 : i32
    %c0_i32_0 = arith.constant 0 : i32
    %c0_i32_1 = arith.constant 0 : i32
    return %c0_i32, %c0_i32_0 : i32, i32
  }
  func.func @transform_5(%arg0: i32) -> (i32, i32) {
    %c0_i32 = arith.constant 0 : i32
    %c0_i32_0 = arith.constant 0 : i32
    %c0_i32_1 = arith.constant 0 : i32
    return %c0_i32, %c0_i32_0 : i32, i32
  }
  func.func @transform_6(%arg0: i32) -> (i32, i32) {
    %c0_i32 = arith.constant 0 : i32
    %c0_i32_0 = arith.constant 0 : i32
    %c0_i32_1 = arith.constant 0 : i32
    return %c0_i32, %c0_i32_0 : i32, i32
  }
  func.func @transform_7(%arg0: i32) -> (i32, i32) {
    %c0_i32 = arith.constant 0 : i32
    %c0_i32_0 = arith.constant 0 : i32
    %c0_i32_1 = arith.constant 0 : i32
    return %c0_i32, %c0_i32_0 : i32, i32
  }
  func.func @transform_8(%arg0: i32) -> (i32, i32) {
    %c0_i32 = arith.constant 0 : i32
    %c0_i32_0 = arith.constant 0 : i32
    %c0_i32_1 = arith.constant 0 : i32
    return %c0_i32, %c0_i32_0 : i32, i32
  }
  func.func @transform_9(%arg0: i32) -> (i32, i32) {
    %c0_i32 = arith.constant 0 : i32
    %c0_i32_0 = arith.constant 0 : i32
    return %arg0, %c0_i32 : i32, i32
  }
}

</mosaic_0001>

<llo_original>
// kernel: tpu_custom_call.1
$region0: #{tpu_custom_call.1}
  #allocation0 [shape = 'u32[]', space=smem, size = 0x4, offset = 0x4, fixed_abs, tag = 'smem constant byte address 0x4 - core index']
  #allocation1 [shape = 'u32[72,128]{1,0:T(1,128)}', space=vmem, size = 0x9000, scoped, tag = 'internal scratch']
  %s0 = inlined_call_operand.hbm [shape: bf16[8,896], index: 0, kind: input, shape index: {}]
  %s1 = inlined_call_operand.hbm [shape: bf16[896,128], index: 1, kind: input, shape index: {}]
  %s2 = inlined_call_operand.vmem [shape: f32[1,128], index: 2, kind: input, shape index: {}]
  %s3 = inlined_call_operand.hbm [shape: bf16[128,128], index: 3, kind: input, shape index: {}]
  %s4 = inlined_call_operand.vmem [shape: f32[1,128], index: 4, kind: input, shape index: {}]
  %s5 = inlined_call_operand.hbm [shape: bf16[128,128], index: 5, kind: input, shape index: {}]
  %s6 = inlined_call_operand.vmem [shape: f32[1,128], index: 6, kind: input, shape index: {}]
  %s7 = inlined_call_operand.hbm [shape: bf16[128,128], index: 7, kind: input, shape index: {}]
  %s8 = inlined_call_operand.vmem [shape: f32[1,128], index: 8, kind: input, shape index: {}]
  %s9 = inlined_call_operand.hbm [shape: f32[8,128], index: 9, kind: output, shape index: {}]
  %s10 = sld [smem:[#allocation0]]
  $region66: #{tpu_custom_call.1} parent=0
    _
  %s12 = ssub.s32 1, %s10
  %s13 = scalar_select 0, %s12, %s10
  $region1: #{tpu_custom_call.1} parent=0
    #allocation2 [shape = 'u8[14336]{0}', space=vmem, size = 0x3800, scoped, tag = 'input window, operand 0, single buffered']
    #allocation3 [shape = 's32[1]{0}', space=sflag, size = 0x4, scoped, tag = 'scoped memory for tpu_custom_call.1']
    #allocation4 [shape = 's32[1]{0}', space=sflag, size = 0x4, scoped, tag = 'scoped memory for tpu_custom_call.1']
    #allocation5 [shape = 'u8[229376]{0}', space=vmem, size = 0x38000, scoped, tag = 'input window, operand 1, single buffered']
    #allocation6 [shape = 's32[1]{0}', space=sflag, size = 0x4, scoped, tag = 'scoped memory for tpu_custom_call.1']
    #allocation7 [shape = 'u8[32768]{0}', space=vmem, size = 0x8000, scoped, tag = 'input window, operand 3, single buffered']
    #allocation8 [shape = 'u8[32768]{0}', space=vmem, size = 0x8000, scoped, tag = 'input window, operand 5, single buffered']
    #allocation9 [shape = 's32[1]{0}', space=sflag, size = 0x4, scoped, tag = 'scoped memory for tpu_custom_call.1']
    #allocation10 [shape = 'u8[32768]{0}', space=vmem, size = 0x8000, scoped, tag = 'input window, operand 7, single buffered']
    #allocation11 [shape = 'u8[4096]{0}', space=vmem, size = 0x1000, scoped, tag = 'output window, operand 0, single buffered']
    %14 = vsyncpa [#allocation3], 0
    %15 = vsyncpa [#allocation6], 0
    %16 = vsyncpa [#allocation9], 0
    %17 = vsyncpa [#allocation4], 0
    // Predicated region
    $region2: #{tpu_custom_call.1} parent=1 // pred_check
      _
    $region3: #{tpu_custom_call.1} parent=1 // pred_check_branch
      %19 = sbr.rel (0) target = $region5
    $region4: #{tpu_custom_call.1} parent=1 // pred_region
      %21 = vsyncadd [#allocation3], 0
      %s23 = sshll.u32 %s0, 4
      %s24 = int_to_ptr.hbm [resolvable:$true] %s23
      %s25 = sshll.u32 [#allocation2], 4
      %s26 = int_to_ptr.vmem [resolvable:$true] %s25
      %28 = dma.hbm_to_vmem [thread:$0]  %s24, 448, %s26, [#allocation3]
    $region5: #{tpu_custom_call.1} parent=1 // pred_fallthru
      _
    // Predicated region
    $region6: #{tpu_custom_call.1} parent=1 // pred_check
      _
    $region7: #{tpu_custom_call.1} parent=1 // pred_check_branch
      %30 = sbr.rel (0) target = $region9
    $region8: #{tpu_custom_call.1} parent=1 // pred_region
      %32 = vsyncadd [#allocation6], 0
      %s33 = sshll.u32 %s1, 4
      %s34 = int_to_ptr.hbm [resolvable:$true] %s33
      %s35 = sshll.u32 [#allocation5], 4
      %s36 = int_to_ptr.vmem [resolvable:$true] %s35
      %41 = dma.hbm_to_vmem [thread:$0]  %s34, 7168, %s36, [#allocation6], 64, 64, 4
    $region9: #{tpu_custom_call.1} parent=1 // pred_fallthru
      _
    // Predicated region
    $region10: #{tpu_custom_call.1} parent=1 // pred_check
      _
    $region11: #{tpu_custom_call.1} parent=1 // pred_check_branch
      %43 = sbr.rel (0) target = $region13
    $region12: #{tpu_custom_call.1} parent=1 // pred_region
      _
    $region13: #{tpu_custom_call.1} parent=1 // pred_fallthru
      _
    // Predicated region
    $region14: #{tpu_custom_call.1} parent=1 // pred_check
      _
    $region15: #{tpu_custom_call.1} parent=1 // pred_check_branch
      %45 = sbr.rel (0) target = $region17
    $region16: #{tpu_custom_call.1} parent=1 // pred_region
      %47 = vsyncadd [#allocation6], 0
      %s48 = sshll.u32 %s3, 4
      %s49 = int_to_ptr.hbm [resolvable:$true] %s48
      %s50 = sshll.u32 [#allocation7], 4
      %s51 = int_to_ptr.vmem [resolvable:$true] %s50
      %56 = dma.hbm_to_vmem [thread:$0]  %s49, 1024, %s51, [#allocation6], 64, 64, 4
    $region17: #{tpu_custom_call.1} parent=1 // pred_fallthru
      _
    // Predicated region
    $region18: #{tpu_custom_call.1} parent=1 // pred_check
      _
    $region19: #{tpu_custom_call.1} parent=1 // pred_check_branch
      %58 = sbr.rel (0) target = $region21
    $region20: #{tpu_custom_call.1} parent=1 // pred_region
      _
    $region21: #{tpu_custom_call.1} parent=1 // pred_fallthru
      _
    // Predicated region
    $region22: #{tpu_custom_call.1} parent=1 // pred_check
      _
    $region23: #{tpu_custom_call.1} parent=1 // pred_check_branch
      %60 = sbr.rel (0) target = $region25
    $region24: #{tpu_custom_call.1} parent=1 // pred_region
      %62 = vsyncadd [#allocation9], 0
      %s63 = sshll.u32 %s5, 4
      %s64 = int_to_ptr.hbm [resolvable:$true] %s63
      %s65 = sshll.u32 [#allocation8], 4
      %s66 = int_to_ptr.vmem [resolvable:$true] %s65
      %71 = dma.hbm_to_vmem [thread:$0]  %s64, 1024, %s66, [#allocation9], 64, 64, 4
    $region25: #{tpu_custom_call.1} parent=1 // pred_fallthru
      _
    // Predicated region
    $region26: #{tpu_custom_call.1} parent=1 // pred_check
      _
    $region27: #{tpu_custom_call.1} parent=1 // pred_check_branch
      %73 = sbr.rel (0) target = $region29
    $region28: #{tpu_custom_call.1} parent=1 // pred_region
      _
    $region29: #{tpu_custom_call.1} parent=1 // pred_fallthru
      _
    // Predicated region
    $region30: #{tpu_custom_call.1} parent=1 // pred_check
      _
    $region31: #{tpu_custom_call.1} parent=1 // pred_check_branch
      %75 = sbr.rel (0) target = $region33
    $region32: #{tpu_custom_call.1} parent=1 // pred_region
      %77 = vsyncadd [#allocation9], 0
      %s78 = sshll.u32 %s7, 4
      %s79 = int_to_ptr.hbm [resolvable:$true] %s78
      %s80 = sshll.u32 [#allocation10], 4
      %s81 = int_to_ptr.vmem [resolvable:$true] %s80
      %86 = dma.hbm_to_vmem [thread:$0]  %s79, 1024, %s81, [#allocation9], 64, 64, 4
    $region33: #{tpu_custom_call.1} parent=1 // pred_fallthru
      _
    // Predicated region
    $region34: #{tpu_custom_call.1} parent=1 // pred_check
      _
    $region35: #{tpu_custom_call.1} parent=1 // pred_check_branch
      %88 = sbr.rel (0) target = $region37
    $region36: #{tpu_custom_call.1} parent=1 // pred_region
      _
    $region37: #{tpu_custom_call.1} parent=1 // pred_fallthru
      _
    // Predicated region
    $region38: #{tpu_custom_call.1} parent=1 // pred_check
      _
    $region39: #{tpu_custom_call.1} parent=1 // pred_check_branch
      %90 = sbr.rel (0) target = $region41
    $region40: #{tpu_custom_call.1} parent=1 // pred_region
      %92 = dma.done [#allocation3], 448
    $region41: #{tpu_custom_call.1} parent=1 // pred_fallthru
      _
    // Predicated region
    $region42: #{tpu_custom_call.1} parent=1 // pred_check
      _
    $region43: #{tpu_custom_call.1} parent=1 // pred_check_branch
      %94 = sbr.rel (0) target = $region45
    $region44: #{tpu_custom_call.1} parent=1 // pred_region
      %96 = dma.done [#allocation6], 7168
    $region45: #{tpu_custom_call.1} parent=1 // pred_fallthru
      _
    // Predicated region
    $region46: #{tpu_custom_call.1} parent=1 // pred_check
      _
    $region47: #{tpu_custom_call.1} parent=1 // pred_check_branch
      %98 = sbr.rel (0) target = $region49
    $region48: #{tpu_custom_call.1} parent=1 // pred_region
      %100 = dma.done [#allocation6], 1024
    $region49: #{tpu_custom_call.1} parent=1 // pred_fallthru
      _
    // Predicated region
    $region50: #{tpu_custom_call.1} parent=1 // pred_check
      _
    $region51: #{tpu_custom_call.1} parent=1 // pred_check_branch
      %102 = sbr.rel (0) target = $region53
    $region52: #{tpu_custom_call.1} parent=1 // pred_region
      %104 = dma.done [#allocation9], 1024
    $region53: #{tpu_custom_call.1} parent=1 // pred_fallthru
      _
    // Predicated region
    $region54: #{tpu_custom_call.1} parent=1 // pred_check
      _
    $region55: #{tpu_custom_call.1} parent=1 // pred_check_branch
      %106 = sbr.rel (0) target = $region57
    $region56: #{tpu_custom_call.1} parent=1 // pred_region
      %108 = dma.done [#allocation9], 1024
    $region57: #{tpu_custom_call.1} parent=1 // pred_fallthru
      _
    %v109 = vld [vmem:[#allocation2] sm:$0xff]
    %v110 = vld [vmem:[#allocation2 + $0x8] sm:$0xff]
    %v111 = vld [vmem:[#allocation2 + $0x10] sm:$0xff]
    %v112 = vld [vmem:[#allocation2 + $0x18] sm:$0xf]
    %v113 = vld [vmem:[#allocation5] sm:$0xf]
    %v114 = vld [vmem:[#allocation5 + $0x4] sm:$0xf]
    %v115 = vld [vmem:[#allocation5 + $0x8] sm:$0xf]
    %v116 = vld [vmem:[#allocation5 + $0xc] sm:$0xf]
    %v117 = vld [vmem:[#allocation5 + $0x10] sm:$0xf]
    %v118 = vld [vmem:[#allocation5 + $0x14] sm:$0xf]
    %v119 = vld [vmem:[#allocation5 + $0x18] sm:$0xf]
    %v120 = vld [vmem:[#allocation5 + $0x1c] sm:$0xf]
    %v121 = vld [vmem:[#allocation5 + $0x20] sm:$0xf]
    %v122 = vld [vmem:[#allocation5 + $0x24] sm:$0xf]
    %v123 = vld [vmem:[#allocation5 + $0x28] sm:$0xf]
    %v124 = vld [vmem:[#allocation5 + $0x2c] sm:$0xf]
    %v125 = vld [vmem:[#allocation5 + $0x30] sm:$0xf]
    %v126 = vld [vmem:[#allocation5 + $0x34] sm:$0xf]
    %v127 = vld [vmem:[#allocation5 + $0x38] sm:$0xf]
    %v128 = vld [vmem:[#allocation5 + $0x3c] sm:$0xf]
    %v129 = vld [vmem:[#allocation5 + $0x40] sm:$0xf]
    %v130 = vld [vmem:[#allocation5 + $0x44] sm:$0xf]
    %v131 = vld [vmem:[#allocation5 + $0x48] sm:$0xf]
    %v132 = vld [vmem:[#allocation5 + $0x4c] sm:$0xf]
    %v133 = vld [vmem:[#allocation5 + $0x50] sm:$0xf]
    %v134 = vld [vmem:[#allocation5 + $0x54] sm:$0xf]
    %v135 = vld [vmem:[#allocation5 + $0x58] sm:$0xf]
    %v136 = vld [vmem:[#allocation5 + $0x5c] sm:$0xf]
    %v137 = vld [vmem:[#allocation5 + $0x60] sm:$0xf]
    %v138 = vld [vmem:[#allocation5 + $0x64] sm:$0xf]
    %v139 = vld [vmem:[#allocation5 + $0x68] sm:$0xf]
    %v140 = vld [vmem:[#allocation5 + $0x6c] sm:$0xf]
    %v141 = vld [vmem:[#allocation5 + $0x70] sm:$0xf]
    %v142 = vld [vmem:[#allocation5 + $0x74] sm:$0xf]
    %v143 = vld [vmem:[#allocation5 + $0x78] sm:$0xf]
    %v144 = vld [vmem:[#allocation5 + $0x7c] sm:$0xf]
    %v145 = vld [vmem:[#allocation5 + $0x80] sm:$0xf]
    %v146 = vld [vmem:[#allocation5 + $0x84] sm:$0xf]
    %v147 = vld [vmem:[#allocation5 + $0x88] sm:$0xf]
    %v148 = vld [vmem:[#allocation5 + $0x8c] sm:$0xf]
    %v149 = vld [vmem:[#allocation5 + $0x90] sm:$0xf]
    %v150 = vld [vmem:[#allocation5 + $0x94] sm:$0xf]
    %v151 = vld [vmem:[#allocation5 + $0x98] sm:$0xf]
    %v152 = vld [vmem:[#allocation5 + $0x9c] sm:$0xf]
    %v153 = vld [vmem:[#allocation5 + $0xa0] sm:$0xf]
    %v154 = vld [vmem:[#allocation5 + $0xa4] sm:$0xf]
    %v155 = vld [vmem:[#allocation5 + $0xa8] sm:$0xf]
    %v156 = vld [vmem:[#allocation5 + $0xac] sm:$0xf]
    %v157 = vld [vmem:[#allocation5 + $0xb0] sm:$0xf]
    %v158 = vld [vmem:[#allocation5 + $0xb4] sm:$0xf]
    %v159 = vld [vmem:[#allocation5 + $0xb8] sm:$0xf]
    %v160 = vld [vmem:[#allocation5 + $0xbc] sm:$0xf]
    %v161 = vld [vmem:[#allocation5 + $0xc0] sm:$0xf]
    %v162 = vld [vmem:[#allocation5 + $0xc4] sm:$0xf]
    %v163 = vld [vmem:[#allocation5 + $0xc8] sm:$0xf]
    %v164 = vld [vmem:[#allocation5 + $0xcc] sm:$0xf]
    %v165 = vld [vmem:[#allocation5 + $0xd0] sm:$0xf]
    %v166 = vld [vmem:[#allocation5 + $0xd4] sm:$0xf]
    %v167 = vld [vmem:[#allocation5 + $0xd8] sm:$0xf]
    %v168 = vld [vmem:[#allocation5 + $0xdc] sm:$0xf]
    %v169 = vld [vmem:[#allocation5 + $0xe0] sm:$0xf]
    %v170 = vld [vmem:[#allocation5 + $0xe4] sm:$0xf]
    %v171 = vld [vmem:[#allocation5 + $0xe8] sm:$0xf]
    %v172 = vld [vmem:[#allocation5 + $0xec] sm:$0xf]
    %v173 = vld [vmem:[#allocation5 + $0xf0] sm:$0xf]
    %v174 = vld [vmem:[#allocation5 + $0xf4] sm:$0xf]
    %v175 = vld [vmem:[#allocation5 + $0xf8] sm:$0xf]
    %v176 = vld [vmem:[#allocation5 + $0xfc] sm:$0xf]
    %v177 = vld [vmem:[#allocation5 + $0x100] sm:$0xf]
    %v178 = vld [vmem:[#allocation5 + $0x104] sm:$0xf]
    %v179 = vld [vmem:[#allocation5 + $0x108] sm:$0xf]
    %v180 = vld [vmem:[#allocation5 + $0x10c] sm:$0xf]
    %v181 = vld [vmem:[#allocation5 + $0x110] sm:$0xf]
    %v182 = vld [vmem:[#allocation5 + $0x114] sm:$0xf]
    %v183 = vld [vmem:[#allocation5 + $0x118] sm:$0xf]
    %v184 = vld [vmem:[#allocation5 + $0x11c] sm:$0xf]
    %v185 = vld [vmem:[#allocation5 + $0x120] sm:$0xf]
    %v186 = vld [vmem:[#allocation5 + $0x124] sm:$0xf]
    %v187 = vld [vmem:[#allocation5 + $0x128] sm:$0xf]
    %v188 = vld [vmem:[#allocation5 + $0x12c] sm:$0xf]
    %v189 = vld [vmem:[#allocation5 + $0x130] sm:$0xf]
    %v190 = vld [vmem:[#allocation5 + $0x134] sm:$0xf]
    %v191 = vld [vmem:[#allocation5 + $0x138] sm:$0xf]
    %v192 = vld [vmem:[#allocation5 + $0x13c] sm:$0xf]
    %v193 = vld [vmem:[#allocation5 + $0x140] sm:$0xf]
    %v194 = vld [vmem:[#allocation5 + $0x144] sm:$0xf]
    %v195 = vld [vmem:[#allocation5 + $0x148] sm:$0xf]
    %v196 = vld [vmem:[#allocation5 + $0x14c] sm:$0xf]
    %v197 = vld [vmem:[#allocation5 + $0x150] sm:$0xf]
    %v198 = vld [vmem:[#allocation5 + $0x154] sm:$0xf]
    %v199 = vld [vmem:[#allocation5 + $0x158] sm:$0xf]
    %v200 = vld [vmem:[#allocation5 + $0x15c] sm:$0xf]
    %v201 = vld [vmem:[#allocation5 + $0x160] sm:$0xf]
    %v202 = vld [vmem:[#allocation5 + $0x164] sm:$0xf]
    %v203 = vld [vmem:[#allocation5 + $0x168] sm:$0xf]
    %v204 = vld [vmem:[#allocation5 + $0x16c] sm:$0xf]
    %v205 = vld [vmem:[#allocation5 + $0x170] sm:$0xf]
    %v206 = vld [vmem:[#allocation5 + $0x174] sm:$0xf]
    %v207 = vld [vmem:[#allocation5 + $0x178] sm:$0xf]
    %v208 = vld [vmem:[#allocation5 + $0x17c] sm:$0xf]
    %v209 = vld [vmem:[#allocation5 + $0x180] sm:$0xf]
    %v210 = vld [vmem:[#allocation5 + $0x184] sm:$0xf]
    %v211 = vld [vmem:[#allocation5 + $0x188] sm:$0xf]
    %v212 = vld [vmem:[#allocation5 + $0x18c] sm:$0xf]
    %v213 = vld [vmem:[#allocation5 + $0x190] sm:$0xf]
    %v214 = vld [vmem:[#allocation5 + $0x194] sm:$0xf]
    %v215 = vld [vmem:[#allocation5 + $0x198] sm:$0xf]
    %v216 = vld [vmem:[#allocation5 + $0x19c] sm:$0xf]
    %v217 = vld [vmem:[#allocation5 + $0x1a0] sm:$0xf]
    %v218 = vld [vmem:[#allocation5 + $0x1a4] sm:$0xf]
    %v219 = vld [vmem:[#allocation5 + $0x1a8] sm:$0xf]
    %v220 = vld [vmem:[#allocation5 + $0x1ac] sm:$0xf]
    %v221 = vld [vmem:[#allocation5 + $0x1b0] sm:$0xf]
    %v222 = vld [vmem:[#allocation5 + $0x1b4] sm:$0xf]
    %v223 = vld [vmem:[#allocation5 + $0x1b8] sm:$0xf]
    %v224 = vld [vmem:[#allocation5 + $0x1bc] sm:$0xf]
    %v225 = vld [vmem:[%s2] sm:$0x1]
    %v227 = vperm.slane %v225, 0
    %v233 = vunpack.c.l.b16 %v109
    %v234 = vunpack.c.h.b16 %v109
    %v235 = vunpack.c.l.b16 %v110
    %v236 = vunpack.c.h.b16 %v110
    %v237 = vunpack.c.l.b16 %v111
    %v238 = vunpack.c.h.b16 %v111
    %v239 = vunpack.c.l.b16 %v112
    %v240 = vpack.c.b16 %v233, %v233
    %v241 = vpack.c.b16 %v234, %v234
    %v242 = vpack.c.b16 %v235, %v235
    %v243 = vpack.c.b16 %v236, %v236
    %v244 = vpack.c.b16 %v237, %v237
    %v245 = vpack.c.b16 %v238, %v238
    %v246 = vpack.c.b16 %v239, %v239
    %v366 = vunpack.c.l.b16 %v113
    %v367 = vunpack.c.l.b16 %v114
    %v368 = vunpack.c.l.b16 %v115
    %v369 = vunpack.c.l.b16 %v116
    %v370 = vunpack.c.l.b16 %v117
    %v371 = vunpack.c.l.b16 %v118
    %v372 = vunpack.c.l.b16 %v119
    %v373 = vunpack.c.l.b16 %v120
    %v374 = vunpack.c.l.b16 %v121
    %v375 = vunpack.c.l.b16 %v122
    %v376 = vunpack.c.l.b16 %v123
    %v377 = vunpack.c.l.b16 %v124
    %v378 = vunpack.c.l.b16 %v125
    %v379 = vunpack.c.l.b16 %v126
    %v380 = vunpack.c.l.b16 %v127
    %v381 = vunpack.c.l.b16 %v128
    %v382 = vunpack.c.l.b16 %v129
    %v383 = vunpack.c.l.b16 %v130
    %v384 = vunpack.c.l.b16 %v131
    %v385 = vunpack.c.l.b16 %v132
    %v386 = vunpack.c.l.b16 %v133
    %v387 = vunpack.c.l.b16 %v134
    %v388 = vunpack.c.l.b16 %v135
    %v389 = vunpack.c.l.b16 %v136
    %v390 = vunpack.c.l.b16 %v137
    %v391 = vunpack.c.l.b16 %v138
    %v392 = vunpack.c.l.b16 %v139
    %v393 = vunpack.c.l.b16 %v140
    %v394 = vunpack.c.l.b16 %v141
    %v395 = vunpack.c.l.b16 %v142
    %v396 = vunpack.c.l.b16 %v143
    %v397 = vunpack.c.l.b16 %v144
    %v398 = vunpack.c.l.b16 %v145
    %v399 = vunpack.c.l.b16 %v146
    %v400 = vunpack.c.l.b16 %v147
    %v401 = vunpack.c.l.b16 %v148
    %v402 = vunpack.c.l.b16 %v149
    %v403 = vunpack.c.l.b16 %v150
    %v404 = vunpack.c.l.b16 %v151
    %v405 = vunpack.c.l.b16 %v152
    %v406 = vunpack.c.l.b16 %v153
    %v407 = vunpack.c.l.b16 %v154
    %v408 = vunpack.c.l.b16 %v155
    %v409 = vunpack.c.l.b16 %v156
    %v410 = vunpack.c.l.b16 %v157
    %v411 = vunpack.c.l.b16 %v158
    %v412 = vunpack.c.l.b16 %v159
    %v413 = vunpack.c.l.b16 %v160
    %v414 = vunpack.c.l.b16 %v161
    %v415 = vunpack.c.l.b16 %v162
    %v416 = vunpack.c.l.b16 %v163
    %v417 = vunpack.c.l.b16 %v164
    %v418 = vunpack.c.l.b16 %v165
    %v419 = vunpack.c.l.b16 %v166
    %v420 = vunpack.c.l.b16 %v167
    %v421 = vunpack.c.l.b16 %v168
    %v422 = vunpack.c.l.b16 %v169
    %v423 = vunpack.c.l.b16 %v170
    %v424 = vunpack.c.l.b16 %v171
    %v425 = vunpack.c.l.b16 %v172
    %v426 = vunpack.c.l.b16 %v173
    %v427 = vunpack.c.l.b16 %v174
    %v428 = vunpack.c.l.b16 %v175
    %v429 = vunpack.c.l.b16 %v176
    %v430 = vunpack.c.l.b16 %v177
    %v431 = vunpack.c.l.b16 %v178
    %v432 = vunpack.c.l.b16 %v179
    %v433 = vunpack.c.l.b16 %v180
    %v434 = vunpack.c.l.b16 %v181
    %v435 = vunpack.c.l.b16 %v182
    %v436 = vunpack.c.l.b16 %v183
    %v437 = vunpack.c.l.b16 %v184
    %v438 = vunpack.c.l.b16 %v185
    %v439 = vunpack.c.l.b16 %v186
    %v440 = vunpack.c.l.b16 %v187
    %v441 = vunpack.c.l.b16 %v188
    %v442 = vunpack.c.l.b16 %v189
    %v443 = vunpack.c.l.b16 %v190
    %v444 = vunpack.c.l.b16 %v191
    %v445 = vunpack.c.l.b16 %v192
    %v446 = vunpack.c.l.b16 %v193
    %v447 = vunpack.c.l.b16 %v194
    %v448 = vunpack.c.l.b16 %v195
    %v449 = vunpack.c.l.b16 %v196
    %v450 = vunpack.c.l.b16 %v197
    %v451 = vunpack.c.l.b16 %v198
    %v452 = vunpack.c.l.b16 %v199
    %v453 = vunpack.c.l.b16 %v200
    %v454 = vunpack.c.l.b16 %v201
    %v455 = vunpack.c.l.b16 %v202
    %v456 = vunpack.c.l.b16 %v203
    %v457 = vunpack.c.l.b16 %v204
    %v458 = vunpack.c.l.b16 %v205
    %v459 = vunpack.c.l.b16 %v206
    %v460 = vunpack.c.l.b16 %v207
    %v461 = vunpack.c.l.b16 %v208
    %v462 = vunpack.c.l.b16 %v209
    %v463 = vunpack.c.l.b16 %v210
    %v464 = vunpack.c.l.b16 %v211
    %v465 = vunpack.c.l.b16 %v212
    %v466 = vunpack.c.l.b16 %v213
    %v467 = vunpack.c.l.b16 %v214
    %v468 = vunpack.c.l.b16 %v215
    %v469 = vunpack.c.l.b16 %v216
    %v470 = vunpack.c.l.b16 %v217
    %v471 = vunpack.c.l.b16 %v218
    %v472 = vunpack.c.l.b16 %v219
    %v473 = vunpack.c.l.b16 %v220
    %v474 = vunpack.c.l.b16 %v221
    %v475 = vunpack.c.l.b16 %v222
    %v476 = vunpack.c.l.b16 %v223
    %v477 = vunpack.c.l.b16 %v224
    %v478 = vpack.c.b16 %v367, %v366
    %v479 = vpack.c.b16 %v369, %v368
    %v480 = vpack.c.b16 %v371, %v370
    %v481 = vpack.c.b16 %v373, %v372
    %v482 = vpack.c.b16 %v375, %v374
    %v483 = vpack.c.b16 %v377, %v376
    %v484 = vpack.c.b16 %v379, %v378
    %v485 = vpack.c.b16 %v381, %v380
    %v486 = vpack.c.b16 %v383, %v382
    %v487 = vpack.c.b16 %v385, %v384
    %v488 = vpack.c.b16 %v387, %v386
    %v489 = vpack.c.b16 %v389, %v388
    %v490 = vpack.c.b16 %v391, %v390
    %v491 = vpack.c.b16 %v393, %v392
    %v492 = vpack.c.b16 %v395, %v394
    %v493 = vpack.c.b16 %v397, %v396
    %v494 = vpack.c.b16 %v399, %v398
    %v495 = vpack.c.b16 %v401, %v400
    %v496 = vpack.c.b16 %v403, %v402
    %v497 = vpack.c.b16 %v405, %v404
    %v498 = vpack.c.b16 %v407, %v406
    %v499 = vpack.c.b16 %v409, %v408
    %v500 = vpack.c.b16 %v411, %v410
    %v501 = vpack.c.b16 %v413, %v412
    %v502 = vpack.c.b16 %v415, %v414
    %v503 = vpack.c.b16 %v417, %v416
    %v504 = vpack.c.b16 %v419, %v418
    %v505 = vpack.c.b16 %v421, %v420
    %v506 = vpack.c.b16 %v423, %v422
    %v507 = vpack.c.b16 %v425, %v424
    %v508 = vpack.c.b16 %v427, %v426
    %v509 = vpack.c.b16 %v429, %v428
    %v510 = vpack.c.b16 %v431, %v430
    %v511 = vpack.c.b16 %v433, %v432
    %v512 = vpack.c.b16 %v435, %v434
    %v513 = vpack.c.b16 %v437, %v436
    %v514 = vpack.c.b16 %v439, %v438
    %v515 = vpack.c.b16 %v441, %v440
    %v516 = vpack.c.b16 %v443, %v442
    %v517 = vpack.c.b16 %v445, %v444
    %v518 = vpack.c.b16 %v447, %v446
    %v519 = vpack.c.b16 %v449, %v448
    %v520 = vpack.c.b16 %v451, %v450
    %v521 = vpack.c.b16 %v453, %v452
    %v522 = vpack.c.b16 %v455, %v454
    %v523 = vpack.c.b16 %v457, %v456
    %v524 = vpack.c.b16 %v459, %v458
    %v525 = vpack.c.b16 %v461, %v460
    %v526 = vpack.c.b16 %v463, %v462
    %v527 = vpack.c.b16 %v465, %v464
    %v528 = vpack.c.b16 %v467, %v466
    %v529 = vpack.c.b16 %v469, %v468
    %v530 = vpack.c.b16 %v471, %v470
    %v531 = vpack.c.b16 %v473, %v472
    %v532 = vpack.c.b16 %v475, %v474
    %v533 = vpack.c.b16 %v477, %v476
    %590 = vmatpush.bf16.msra.mxu0 %v485
    %591 = vmatpush.bf16.msra.mxu0 %v484
    %592 = vmatpush.bf16.msra.mxu0 %v483
    %593 = vmatpush.bf16.msra.mxu0 %v482
    %594 = vmatpush.bf16.msra.mxu0 %v481
    %595 = vmatpush.bf16.msra.mxu0 %v480
    %596 = vmatpush.bf16.msra.mxu0 %v479
    %597 = vmatpush.bf16.msra.mxu0 %v478
    %598 = vmatmul.bf16.gmra.mxu0 %v240
    %v599 = vpop.f32.mrf.mxu0
    %v600 = vadd.f32 %v227, %v599
    %v601 = vpop.f32.mrf.mxu0
    %602 = vdwg.mxu0
    %603 = vmatpush.bf16.msra.mxu0 %v493
    %604 = vmatpush.bf16.msra.mxu0 %v492
    %605 = vmatpush.bf16.msra.mxu0 %v491
    %606 = vmatpush.bf16.msra.mxu0 %v490
    %607 = vmatpush.bf16.msra.mxu0 %v489
    %608 = vmatpush.bf16.msra.mxu0 %v488
    %609 = vmatpush.bf16.msra.mxu0 %v487
    %610 = vmatpush.bf16.msra.mxu0 %v486
    %611 = vmatmul.bf16.gmra.mxu0 %v241
    %v612 = vpop.f32.mrf.mxu0
    %v613 = vadd.f32 %v600, %v612
    %v614 = vpop.f32.mrf.mxu0
    %615 = vdwg.mxu0
    %616 = vmatpush.bf16.msra.mxu0 %v501
    %617 = vmatpush.bf16.msra.mxu0 %v500
    %618 = vmatpush.bf16.msra.mxu0 %v499
    %619 = vmatpush.bf16.msra.mxu0 %v498
    %620 = vmatpush.bf16.msra.mxu0 %v497
    %621 = vmatpush.bf16.msra.mxu0 %v496
    %622 = vmatpush.bf16.msra.mxu0 %v495
    %623 = vmatpush.bf16.msra.mxu0 %v494
    %624 = vmatmul.bf16.gmra.mxu0 %v242
    %v625 = vpop.f32.mrf.mxu0
    %v626 = vadd.f32 %v613, %v625
    %v627 = vpop.f32.mrf.mxu0
    %628 = vdwg.mxu0
    %629 = vmatpush.bf16.msra.mxu0 %v509
    %630 = vmatpush.bf16.msra.mxu0 %v508
    %631 = vmatpush.bf16.msra.mxu0 %v507
    %632 = vmatpush.bf16.msra.mxu0 %v506
    %633 = vmatpush.bf16.msra.mxu0 %v505
    %634 = vmatpush.bf16.msra.mxu0 %v504
    %635 = vmatpush.bf16.msra.mxu0 %v503
    %636 = vmatpush.bf16.msra.mxu0 %v502
    %637 = vmatmul.bf16.gmra.mxu0 %v243
    %v638 = vpop.f32.mrf.mxu0
    %v639 = vadd.f32 %v626, %v638
    %v640 = vpop.f32.mrf.mxu0
    %641 = vdwg.mxu0
    %642 = vmatpush.bf16.msra.mxu0 %v517
    %643 = vmatpush.bf16.msra.mxu0 %v516
    %644 = vmatpush.bf16.msra.mxu0 %v515
    %645 = vmatpush.bf16.msra.mxu0 %v514
    %646 = vmatpush.bf16.msra.mxu0 %v513
    %647 = vmatpush.bf16.msra.mxu0 %v512
    %648 = vmatpush.bf16.msra.mxu0 %v511
    %649 = vmatpush.bf16.msra.mxu0 %v510
    %650 = vmatmul.bf16.gmra.mxu0 %v244
    %v651 = vpop.f32.mrf.mxu0
    %v652 = vadd.f32 %v639, %v651
    %v653 = vpop.f32.mrf.mxu0
    %654 = vdwg.mxu0
    %655 = vmatpush.bf16.msra.mxu0 %v525
    %656 = vmatpush.bf16.msra.mxu0 %v524
    %657 = vmatpush.bf16.msra.mxu0 %v523
    %658 = vmatpush.bf16.msra.mxu0 %v522
    %659 = vmatpush.bf16.msra.mxu0 %v521
    %660 = vmatpush.bf16.msra.mxu0 %v520
    %661 = vmatpush.bf16.msra.mxu0 %v519
    %662 = vmatpush.bf16.msra.mxu0 %v518
    %663 = vmatmul.bf16.gmra.mxu0 %v245
    %v664 = vpop.f32.mrf.mxu0
    %v665 = vadd.f32 %v652, %v664
    %v666 = vpop.f32.mrf.mxu0
    %667 = vdwg.mxu0
    %668 = vmatpush.bf16.msra.mxu0 %v533
    %669 = vmatpush.bf16.msra.mxu0 %v532
    %670 = vmatpush.bf16.msra.mxu0 %v531
    %671 = vmatpush.bf16.msra.mxu0 %v530
    %672 = vmatpush.bf16.msra.mxu0 %v529
    %673 = vmatpush.bf16.msra.mxu0 %v528
    %674 = vmatpush.bf16.msra.mxu0 %v527
    %675 = vmatpush.bf16.msra.mxu0 %v526
    %676 = vmatmul.bf16.gmra.mxu0 %v246
    %v677 = vpop.f32.mrf.mxu0
    %v678 = vadd.f32 %v665, %v677
    %v679 = vpop.f32.mrf.mxu0
    %680 = vdwg.mxu0
    %v681 = vmax.f32 %v678, 0.0
    %v682 = vpack.c.bf16 %v681, %v681
    %v683 = vld [vmem:[#allocation7] sm:$0xf]
    %v684 = vld [vmem:[#allocation7 + $0x4] sm:$0xf]
    %v685 = vld [vmem:[#allocation7 + $0x8] sm:$0xf]
    %v686 = vld [vmem:[#allocation7 + $0xc] sm:$0xf]
    %v687 = vld [vmem:[#allocation7 + $0x10] sm:$0xf]
    %v688 = vld [vmem:[#allocation7 + $0x14] sm:$0xf]
    %v689 = vld [vmem:[#allocation7 + $0x18] sm:$0xf]
    %v690 = vld [vmem:[#allocation7 + $0x1c] sm:$0xf]
    %v691 = vld [vmem:[#allocation7 + $0x20] sm:$0xf]
    %v692 = vld [vmem:[#allocation7 + $0x24] sm:$0xf]
    %v693 = vld [vmem:[#allocation7 + $0x28] sm:$0xf]
    %v694 = vld [vmem:[#allocation7 + $0x2c] sm:$0xf]
    %v695 = vld [vmem:[#allocation7 + $0x30] sm:$0xf]
    %v696 = vld [vmem:[#allocation7 + $0x34] sm:$0xf]
    %v697 = vld [vmem:[#allocation7 + $0x38] sm:$0xf]
    %v698 = vld [vmem:[#allocation7 + $0x3c] sm:$0xf]
    %v699 = vld [vmem:[%s4] sm:$0x1]
    %v701 = vperm.slane %v699, 0
    %v719 = vunpack.c.l.b16 %v683
    %v720 = vunpack.c.l.b16 %v684
    %v721 = vunpack.c.l.b16 %v685
    %v722 = vunpack.c.l.b16 %v686
    %v723 = vunpack.c.l.b16 %v687
    %v724 = vunpack.c.l.b16 %v688
    %v725 = vunpack.c.l.b16 %v689
    %v726 = vunpack.c.l.b16 %v690
    %v727 = vunpack.c.l.b16 %v691
    %v728 = vunpack.c.l.b16 %v692
    %v729 = vunpack.c.l.b16 %v693
    %v730 = vunpack.c.l.b16 %v694
    %v731 = vunpack.c.l.b16 %v695
    %v732 = vunpack.c.l.b16 %v696
    %v733 = vunpack.c.l.b16 %v697
    %v734 = vunpack.c.l.b16 %v698
    %v735 = vpack.c.b16 %v720, %v719
    %v736 = vpack.c.b16 %v722, %v721
    %v737 = vpack.c.b16 %v724, %v723
    %v738 = vpack.c.b16 %v726, %v725
    %v739 = vpack.c.b16 %v728, %v727
    %v740 = vpack.c.b16 %v730, %v729
    %v741 = vpack.c.b16 %v732, %v731
    %v742 = vpack.c.b16 %v734, %v733
    %751 = vmatpush.bf16.msra.mxu0 %v742
    %752 = vmatpush.bf16.msra.mxu0 %v741
    %753 = vmatpush.bf16.msra.mxu0 %v740
    %754 = vmatpush.bf16.msra.mxu0 %v739
    %755 = vmatpush.bf16.msra.mxu0 %v738
    %756 = vmatpush.bf16.msra.mxu0 %v737
    %757 = vmatpush.bf16.msra.mxu0 %v736
    %758 = vmatpush.bf16.msra.mxu0 %v735
    %759 = vmatmul.bf16.gmra.mxu0 %v682
    %v760 = vpop.f32.mrf.mxu0
    %v761 = vadd.f32 %v701, %v760
    %v762 = vpop.f32.mrf.mxu0
    %763 = vdwg.mxu0
    %v764 = vmax.f32 %v761, 0.0
    %v765 = vpack.c.bf16 %v764, %v764
    %v766 = vld [vmem:[#allocation8] sm:$0xf]
    %v767 = vld [vmem:[#allocation8 + $0x4] sm:$0xf]
    %v768 = vld [vmem:[#allocation8 + $0x8] sm:$0xf]
    %v769 = vld [vmem:[#allocation8 + $0xc] sm:$0xf]
    %v770 = vld [vmem:[#allocation8 + $0x10] sm:$0xf]
    %v771 = vld [vmem:[#allocation8 + $0x14] sm:$0xf]
    %v772 = vld [vmem:[#allocation8 + $0x18] sm:$0xf]
    %v773 = vld [vmem:[#allocation8 + $0x1c] sm:$0xf]
    %v774 = vld [vmem:[#allocation8 + $0x20] sm:$0xf]
    %v775 = vld [vmem:[#allocation8 + $0x24] sm:$0xf]
    %v776 = vld [vmem:[#allocation8 + $0x28] sm:$0xf]
    %v777 = vld [vmem:[#allocation8 + $0x2c] sm:$0xf]
    %v778 = vld [vmem:[#allocation8 + $0x30] sm:$0xf]
    %v779 = vld [vmem:[#allocation8 + $0x34] sm:$0xf]
    %v780 = vld [vmem:[#allocation8 + $0x38] sm:$0xf]
    %v781 = vld [vmem:[#allocation8 + $0x3c] sm:$0xf]
    %v782 = vld [vmem:[%s6] sm:$0x1]
    %v784 = vperm.slane %v782, 0
    %v802 = vunpack.c.l.b16 %v766
    %v803 = vunpack.c.l.b16 %v767
    %v804 = vunpack.c.l.b16 %v768
    %v805 = vunpack.c.l.b16 %v769
    %v806 = vunpack.c.l.b16 %v770
    %v807 = vunpack.c.l.b16 %v771
    %v808 = vunpack.c.l.b16 %v772
    %v809 = vunpack.c.l.b16 %v773
    %v810 = vunpack.c.l.b16 %v774
    %v811 = vunpack.c.l.b16 %v775
    %v812 = vunpack.c.l.b16 %v776
    %v813 = vunpack.c.l.b16 %v777
    %v814 = vunpack.c.l.b16 %v778
    %v815 = vunpack.c.l.b16 %v779
    %v816 = vunpack.c.l.b16 %v780
    %v817 = vunpack.c.l.b16 %v781
    %v818 = vpack.c.b16 %v803, %v802
    %v819 = vpack.c.b16 %v805, %v804
    %v820 = vpack.c.b16 %v807, %v806
    %v821 = vpack.c.b16 %v809, %v808
    %v822 = vpack.c.b16 %v811, %v810
    %v823 = vpack.c.b16 %v813, %v812
    %v824 = vpack.c.b16 %v815, %v814
    %v825 = vpack.c.b16 %v817, %v816
    %834 = vmatpush.bf16.msra.mxu0 %v825
    %835 = vmatpush.bf16.msra.mxu0 %v824
    %836 = vmatpush.bf16.msra.mxu0 %v823
    %837 = vmatpush.bf16.msra.mxu0 %v822
    %838 = vmatpush.bf16.msra.mxu0 %v821
    %839 = vmatpush.bf16.msra.mxu0 %v820
    %840 = vmatpush.bf16.msra.mxu0 %v819
    %841 = vmatpush.bf16.msra.mxu0 %v818
    %842 = vmatmul.bf16.gmra.mxu0 %v765
    %v843 = vpop.f32.mrf.mxu0
    %v844 = vadd.f32 %v784, %v843
    %v845 = vpop.f32.mrf.mxu0
    %846 = vdwg.mxu0
    %v847 = vmax.f32 %v844, 0.0
    %v848 = vpack.c.bf16 %v847, %v847
    %v849 = vld [vmem:[#allocation10] sm:$0xf]
    %v850 = vld [vmem:[#allocation10 + $0x4] sm:$0xf]
    %v851 = vld [vmem:[#allocation10 + $0x8] sm:$0xf]
    %v852 = vld [vmem:[#allocation10 + $0xc] sm:$0xf]
    %v853 = vld [vmem:[#allocation10 + $0x10] sm:$0xf]
    %v854 = vld [vmem:[#allocation10 + $0x14] sm:$0xf]
    %v855 = vld [vmem:[#allocation10 + $0x18] sm:$0xf]
    %v856 = vld [vmem:[#allocation10 + $0x1c] sm:$0xf]
    %v857 = vld [vmem:[#allocation10 + $0x20] sm:$0xf]
    %v858 = vld [vmem:[#allocation10 + $0x24] sm:$0xf]
    %v859 = vld [vmem:[#allocation10 + $0x28] sm:$0xf]
    %v860 = vld [vmem:[#allocation10 + $0x2c] sm:$0xf]
    %v861 = vld [vmem:[#allocation10 + $0x30] sm:$0xf]
    %v862 = vld [vmem:[#allocation10 + $0x34] sm:$0xf]
    %v863 = vld [vmem:[#allocation10 + $0x38] sm:$0xf]
    %v864 = vld [vmem:[#allocation10 + $0x3c] sm:$0xf]
    %v865 = vld [vmem:[%s8] sm:$0x1]
    %v867 = vperm.slane %v865, 0
    %v885 = vunpack.c.l.b16 %v849
    %v886 = vunpack.c.l.b16 %v850
    %v887 = vunpack.c.l.b16 %v851
    %v888 = vunpack.c.l.b16 %v852
    %v889 = vunpack.c.l.b16 %v853
    %v890 = vunpack.c.l.b16 %v854
    %v891 = vunpack.c.l.b16 %v855
    %v892 = vunpack.c.l.b16 %v856
    %v893 = vunpack.c.l.b16 %v857
    %v894 = vunpack.c.l.b16 %v858
    %v895 = vunpack.c.l.b16 %v859
    %v896 = vunpack.c.l.b16 %v860
    %v897 = vunpack.c.l.b16 %v861
    %v898 = vunpack.c.l.b16 %v862
    %v899 = vunpack.c.l.b16 %v863
    %v900 = vunpack.c.l.b16 %v864
    %v901 = vpack.c.b16 %v886, %v885
    %v902 = vpack.c.b16 %v888, %v887
    %v903 = vpack.c.b16 %v890, %v889
    %v904 = vpack.c.b16 %v892, %v891
    %v905 = vpack.c.b16 %v894, %v893
    %v906 = vpack.c.b16 %v896, %v895
    %v907 = vpack.c.b16 %v898, %v897
    %v908 = vpack.c.b16 %v900, %v899
    %917 = vmatpush.bf16.msra.mxu0 %v908
    %918 = vmatpush.bf16.msra.mxu0 %v907
    %919 = vmatpush.bf16.msra.mxu0 %v906
    %920 = vmatpush.bf16.msra.mxu0 %v905
    %921 = vmatpush.bf16.msra.mxu0 %v904
    %922 = vmatpush.bf16.msra.mxu0 %v903
    %923 = vmatpush.bf16.msra.mxu0 %v902
    %924 = vmatpush.bf16.msra.mxu0 %v901
    %925 = vmatmul.bf16.gmra.mxu0 %v848
    %v926 = vpop.f32.mrf.mxu0
    %v927 = vadd.f32 %v867, %v926
    %v928 = vpop.f32.mrf.mxu0
    %929 = vdwg.mxu0
    %v930 = vlaneseq
    %v931 = vand.u32 %v930, 127
    %vm932 = vcmp.lt.s32.totalorder %v931, 10
    %v933 = vsel %vm932, %v927, -1e+30
    %934 = vmax.xlane.f32.xlu0 %v933
    %v935 = vpop.xlane.xlu0 %934
    %v936 = vsub.f32 %v933, %v935
    %v937 = vmul.f32 %v936, 1.442695
    %v938 = vpow.pop %v937
    %939 = vadd.xlane.f32.xlu0 %v938
    %v940 = vpop.xlane.xlu0 %939
    %v941 = vlog2.pop %v940
    %v942 = vmul.f32 %v941, 0.6931472
    %v943 = vadd.f32 %v942, %v935
    %v944 = vsub.f32 %v933, %v943
    %945 = vst [vmem:[#allocation11] sm:$0xff] %v944
    // Predicated region
    $region58: #{tpu_custom_call.1} parent=1 // pred_check
      _
    $region59: #{tpu_custom_call.1} parent=1 // pred_check_branch
      %947 = sbr.rel (0) target = $region61
    $region60: #{tpu_custom_call.1} parent=1 // pred_region
      %949 = vsyncadd [#allocation4], 0
      %s951 = sshll.u32 [#allocation11], 4
      %s952 = int_to_ptr.vmem [resolvable:$true] %s951
      %s953 = sshll.u32 %s9, 4
      %s954 = int_to_ptr.hbm [resolvable:$true] %s953
      %956 = dma.vmem_to_hbm [thread:$0]  %s952, 128, %s954, [#allocation4]
    $region61: #{tpu_custom_call.1} parent=1 // pred_fallthru
      _
    // Predicated region
    $region62: #{tpu_custom_call.1} parent=1 // pred_check
      _
    $region63: #{tpu_custom_call.1} parent=1 // pred_check_branch
      %958 = sbr.rel (0) target = $region65
    $region64: #{tpu_custom_call.1} parent=1 // pred_region
      %960 = dma.done [#allocation4], 128
    $region65: #{tpu_custom_call.1} parent=1 // pred_fallthru
      _
    %961 = vsyncpa [#allocation3], 1
    %962 = vsyncpa [#allocation6], 1
    %963 = vsyncpa [#allocation9], 1
    %964 = vsyncpa [#allocation4], 1

</llo_original>
